<compile_context>
chip_gen: v7x
topology: tpu7x:2x2x1
jax: 0.10.0
libtpu: 0.0.40
codegen_flags: <defaults>
</compile_context>

<pallas_src>
import jax
import jax.numpy as jnp
from jax.experimental import pallas as pl
from jax.experimental.pallas import tpu as pltpu


def _round_up(x, k):
    return ((x + k - 1) // k) * k


# ----------------------------------------------------------------------------
# Pallas kernel: fused (gather+first-layer) matmul + hidden layers + final NCE fc
# ----------------------------------------------------------------------------
def _nce_fused_kernel(idx_ref, t_ref, b0_ref, wh_ref, bh_ref, fcw_ref, fcb_ref, out_ref):
    tb, m = idx_ref.shape           # batch tile, n_attributes
    ma_pad, H = t_ref.shape         # m * padded-arity, hidden_dim
    a_pad = ma_pad // m
    L = wh_ref.shape[0]
    mm_dtype = t_ref.dtype          # matmul operand dtype (bf16); accumulation is f32

    # --- Concatenated one-hot over all attributes: column i*a_pad + idx[:, i] is hot.
    #     Pure compares + ORs (no select), single bool->bf16 cast.
    idx = idx_ref[...]
    col = jax.lax.broadcasted_iota(jnp.int32, (tb, ma_pad), 1)
    mask = col == idx[:, 0:1]
    for i in range(1, m):
        mask = mask | (col == (idx[:, i:i + 1] + i * a_pad))
    onehot = mask.astype(mm_dtype)

    # --- Fused embedding gather + first Linear: one matmul against the precomputed
    #     table T = concat_i(emb_i @ W0_i);  x_flat @ W0 == onehot_cat @ T.
    h = jnp.dot(onehot, t_ref[...], preferred_element_type=jnp.float32)
    h = jnp.maximum(h + b0_ref[...], 0.0)

    # --- Hidden layers with residual connections (residual_connections=True).
    for l in range(L):
        z = jnp.dot(h.astype(mm_dtype), wh_ref[l], preferred_element_type=jnp.float32)
        z = jnp.maximum(z + bh_ref[l], 0.0)
        h = h + z

    # --- Final NCE fc (hidden_dim -> 1), produced directly as a lane-dense (1, tb) row:
    #     (1,H) x (tb,H)^T on the (idle) MXU, f32 accumulate, + bias.
    logits_row = jax.lax.dot_general(
        fcw_ref[...], h.astype(mm_dtype),
        dimension_numbers=(((1,), (1,)), ((), ())),
        preferred_element_type=jnp.float32) + fcb_ref[...]
    out_ref[0] = logits_row          # out_ref block is (1, 1, tb)


def nce_logits_pallas(inputs, emb, w0, b0, wh, bh, fcw, fcb, *,
                      compute_dtype=jnp.bfloat16, max_tile_b=1024):
    """inputs: (N, m) int ids -> NCE logits (N,) f32 via a single fused Pallas kernel."""
    idx = inputs.astype(jnp.int32)
    N, m = idx.shape
    _, a_pad, d = emb.shape
    H = w0.shape[1]
    L = wh.shape[0]

    # Precompute the fused gather+first-layer table T = concat_i(emb_i @ W0_i), bf16.
    w0_blocks = w0.reshape(m, d, H)
    t_tab = jnp.einsum('mad,mdh->mah', emb, w0_blocks).reshape(m * a_pad, H)
    t_tab = t_tab.astype(compute_dtype)
    wh_c = wh.astype(compute_dtype)          # bf16 hidden weights actually passed now
    fcw_c = fcw.astype(compute_dtype)

    # Batch tiling: guarantee >= 2 grid steps when padded batch > 8 (v7x megacore),
    # large tiles (<= max_tile_b) to amortize per-step overhead; always a multiple of 8.
    n_pad8 = _round_up(N, 8)
    if n_pad8 <= 8:
        tile_b = n_pad8
    else:
        tile_b = min(max_tile_b, _round_up(-(-n_pad8 // 2), 8))
    n_pad = _round_up(n_pad8, tile_b)
    if n_pad != N:
        idx = jnp.pad(idx, ((0, n_pad - N), (0, 0)))  # pad ids with 0 (valid, discarded)
    n_grid = n_pad // tile_b

    # Explicit VMEM budget (v7x: 64 MiB physical). Weight blocks are double-buffered.
    weights_bytes = (t_tab.size + wh_c.size + fcw_c.size) * 2 \
        + (b0.size + bh.size + fcb.size) * 4
    step_bytes = 2 * (tile_b * m * 4) + 2 * (tile_b * 4)        # idx + out tiles (x2 bufs)
    work_bytes = tile_b * (m * a_pad) * 8 + tile_b * H * 16     # one-hot + h/z temps
    est = 2 * weights_bytes + step_bytes + work_bytes + (2 << 20)
    try:
        phys_vmem = pltpu.get_tpu_info().vmem_capacity_bytes
    except Exception:
        phys_vmem = 64 * 1024 * 1024
    vmem_limit = int(min(phys_vmem // 2, max(16 * 1024 * 1024, 2 * est)))

    out = pl.pallas_call(
        _nce_fused_kernel,
        out_shape=jax.ShapeDtypeStruct((n_grid, 1, tile_b), jnp.float32),
        grid_spec=pltpu.PrefetchScalarGridSpec(
            num_scalar_prefetch=0,
            grid=(n_grid,),
            in_specs=[
                pl.BlockSpec((tile_b, m), lambda i: (i, 0)),          # attribute ids
                pl.BlockSpec((m * a_pad, H), lambda i: (0, 0)),       # fused emb@W0 table
                pl.BlockSpec((1, H), lambda i: (0, 0)),               # b0
                pl.BlockSpec((L, H, H), lambda i: (0, 0, 0)),         # hidden weights (bf16)
                pl.BlockSpec((L, 1, H), lambda i: (0, 0, 0)),         # hidden biases (f32)
                pl.BlockSpec((1, H), lambda i: (0, 0)),               # fc weight (bf16)
                pl.BlockSpec((1, 1), lambda i: (0, 0)),               # fc bias (f32)
            ],
            out_specs=pl.BlockSpec((1, 1, tile_b), lambda i: (i, 0, 0)),
        ),
        compiler_params=pltpu.CompilerParams(
            dimension_semantics=("parallel",),
            vmem_limit_bytes=vmem_limit),
    )(idx, t_tab, b0, wh_c, bh, fcw_c, fcb)
    return out.reshape(n_pad)[:N]


# ----------------------------------------------------------------------------
# Model glue (parameters, negative sampling, NCE loss) in plain JAX
# ----------------------------------------------------------------------------
def init_params(key, arities, embedding_dim, hidden_dim, hidden_layers):
    m = len(arities)
    a_pad = max(8, _round_up(max(arities), 8))
    keys = jax.random.split(key, m + 3)
    # Embedding tables stacked + zero-padded to a common (sublane-aligned) arity.
    emb = jnp.zeros((m, a_pad, embedding_dim), jnp.float32)
    for i, a in enumerate(arities):
        emb = emb.at[i, :a, :].set(
            jax.random.normal(keys[i], (a, embedding_dim), jnp.float32))
    F = m * embedding_dim
    w0 = jax.random.normal(keys[m], (F, hidden_dim), jnp.float32) / jnp.sqrt(jnp.float32(F))
    b0 = jnp.zeros((1, hidden_dim), jnp.float32)
    wh = (jax.random.normal(keys[m + 1], (hidden_layers, hidden_dim, hidden_dim),
                            jnp.float32) / jnp.sqrt(jnp.float32(hidden_dim)))
    bh = jnp.zeros((hidden_layers, 1, hidden_dim), jnp.float32)
    fcw = (jax.random.normal(keys[m + 2], (1, hidden_dim), jnp.float32)
           / jnp.sqrt(jnp.float32(hidden_dim)))            # nn.Linear(hidden_dim, 1) weight
    fcb = jnp.zeros((1, 1), jnp.float32)
    # Uniform noise distribution (noise_dist=None branch of the PyTorch module).
    noise_dist = [jnp.ones((a,), jnp.float32) / a for a in arities]
    return dict(emb=emb, w0=w0, b0=b0, wh=wh, bh=bh, fcw=fcw, fcb=fcb,
                noise_dist=noise_dist)


def log_probability(params, inputs):
    """Estimated log-probabilities, shape (N,) — fc(nn(embed(inputs)))."""
    return nce_logits_pallas(inputs, params["emb"], params["w0"], params["b0"],
                             params["wh"], params["bh"], params["fcw"], params["fcb"])


def get_neg_samples(key, params, inputs, n_noise_samples):
    n, m = inputs.shape
    K = n_noise_samples
    neg = jnp.tile(inputs, (m * K, 1))
    probs = jnp.ones((neg.shape[0],), jnp.float32)
    keys = jax.random.split(key, m)
    for i in range(m):
        k, l = n * K * i, n * K * (i + 1)
        samples = jax.random.categorical(
            keys[i], jnp.log(params["noise_dist"][i]), shape=(n * K,)
        ).astype(inputs.dtype)
        neg = neg.at[k:l, i].set(samples)
        probs = probs.at[k:l].set(params["noise_dist"][i][samples])
    return neg, probs


def nce_loss(params, inputs, key, n_noise_samples):
    """Training-mode forward: NCE loss, shape (1,). Mirrors the reference _loss()."""
    m = inputs.shape[1]
    neg, probs = get_neg_samples(key, params, inputs, n_noise_samples)
    all_inputs = jnp.concatenate([neg, inputs], axis=0)
    preds = log_probability(params, all_inputs)
    pos_noise = jnp.stack(
        [params["noise_dist"][i][inputs[:, i]] for i in range(m)], axis=1)
    offset = jnp.concatenate([jnp.log(probs), jnp.log(pos_noise).mean(axis=1)])
    preds = preds - offset
    labels = jnp.concatenate(
        [jnp.zeros((neg.shape[0],), jnp.float32),
         jnp.ones((inputs.shape[0],), jnp.float32)])
    # BCEWithLogitsLoss (mean reduction), numerically stable form.
    loss = jnp.mean(jnp.maximum(preds, 0.0) - preds * labels
                    + jnp.log1p(jnp.exp(-jnp.abs(preds))))
    return loss.reshape((1,))


def forward(params, inputs, *, training, key=None, n_noise_samples=3):
    if training:
        return nce_loss(params, inputs, key, n_noise_samples)
    return -log_probability(params, inputs)


# ----------------------------------------------------------------------------
if __name__ == "__main__":
    arities = [5, 7, 3, 6]          # n_attributes = 4
    embedding_dim = 32
    hidden_dim = 16
    hidden_layers = 2
    n_noise_samples = 3
    batch = 8

    root = jax.random.PRNGKey(0)
    k_params, k_inputs, k_noise = jax.random.split(root, 3)

    params = init_params(k_params, arities, embedding_dim, hidden_dim, hidden_layers)

    cols = []
    in_keys = jax.random.split(k_inputs, len(arities))
    for i, a in enumerate(arities):
        cols.append(jax.random.randint(in_keys[i], (batch,), 0, a, dtype=jnp.int32))
    inputs = jnp.stack(cols, axis=1)   # (batch, n_attributes) int32

    # Training-mode forward: NCE loss, shape (1,)
    loss = forward(params, inputs, training=True, key=k_noise,
                   n_noise_samples=n_noise_samples)
    jax.block_until_ready(loss)

    # Eval-mode forward: anomaly scores, shape (batch,)
    scores = forward(params, inputs, training=False)
    jax.block_until_ready(scores)

    assert loss.shape == (1,)
    assert scores.shape == (batch,)
    print("KERNEL_OK")
</pallas_src>

<mosaic_0001>
module attributes {stable_mosaic.version = 11 : i64} {
  func.func @_nce_fused_kernel(%arg0: i32, %arg1: memref<56x4xi32, #tpu.memory_space<vmem>>, %arg2: memref<32x16xbf16, #tpu.memory_space<vmem>>, %arg3: memref<1x16xf32, #tpu.memory_space<vmem>>, %arg4: memref<2x16x16xbf16, #tpu.memory_space<vmem>>, %arg5: memref<2x1x16xf32, #tpu.memory_space<vmem>>, %arg6: memref<1x16xbf16, #tpu.memory_space<vmem>>, %arg7: memref<1x1xf32, #tpu.memory_space<vmem>>, %arg8: memref<1x1x56xf32, #tpu.memory_space<vmem>>) attributes {dimension_semantics = [#tpu.dimension_semantics<parallel>], iteration_bounds = array<i64: 2>, scalar_prefetch = 0 : i64, scratch_operands = 0 : i64, tpu.core_type = #tpu.core_type<tc>, window_params = [{transform_indices = @transform_0, window_bounds = array<i64: 56, 4>}, {pipeline_mode = #tpu.pipeline_mode<synchronous>, transform_indices = @transform_1, window_bounds = array<i64: 32, 16>}, {pipeline_mode = #tpu.pipeline_mode<synchronous>, transform_indices = @transform_2, window_bounds = array<i64: 1, 16>}, {pipeline_mode = #tpu.pipeline_mode<synchronous>, transform_indices = @transform_3, window_bounds = array<i64: 2, 16, 16>}, {pipeline_mode = #tpu.pipeline_mode<synchronous>, transform_indices = @transform_4, window_bounds = array<i64: 2, 1, 16>}, {pipeline_mode = #tpu.pipeline_mode<synchronous>, transform_indices = @transform_5, window_bounds = array<i64: 1, 16>}, {pipeline_mode = #tpu.pipeline_mode<synchronous>, transform_indices = @transform_6, window_bounds = array<i64: 1, 1>}, {transform_indices = @transform_7, window_bounds = array<i64: 1, 1, 56>}]} {
    %c0 = arith.constant 0 : index
    %c0_0 = arith.constant 0 : index
    %0 = vector.load %arg1[%c0, %c0_0] : memref<56x4xi32, #tpu.memory_space<vmem>>, vector<56x4xi32>
    %1 = tpu.iota {dimensions = array<i32: 1>} : vector<56x32xi32>
    %2 = vector.extract_strided_slice %0 {offsets = [0, 0], sizes = [56, 1], strides = [1, 1]} : vector<56x4xi32> to vector<56x1xi32>
    %3 = vector.broadcast %2 : vector<56x1xi32> to vector<56x32xi32>
    %4 = arith.cmpi eq, %1, %3 : vector<56x32xi32>
    %5 = vector.extract_strided_slice %0 {offsets = [0, 1], sizes = [56, 1], strides = [1, 1]} : vector<56x4xi32> to vector<56x1xi32>
    %c8_i32 = arith.constant 8 : i32
    %6 = vector.broadcast %c8_i32 : i32 to vector<56x1xi32>
    %7 = arith.addi %5, %6 : vector<56x1xi32>
    %8 = vector.broadcast %7 : vector<56x1xi32> to vector<56x32xi32>
    %9 = arith.cmpi eq, %1, %8 : vector<56x32xi32>
    %10 = arith.ori %4, %9 : vector<56x32xi1>
    %11 = vector.extract_strided_slice %0 {offsets = [0, 2], sizes = [56, 1], strides = [1, 1]} : vector<56x4xi32> to vector<56x1xi32>
    %c16_i32 = arith.constant 16 : i32
    %12 = vector.broadcast %c16_i32 : i32 to vector<56x1xi32>
    %13 = arith.addi %11, %12 : vector<56x1xi32>
    %14 = vector.broadcast %13 : vector<56x1xi32> to vector<56x32xi32>
    %15 = arith.cmpi eq, %1, %14 : vector<56x32xi32>
    %16 = arith.ori %10, %15 : vector<56x32xi1>
    %17 = vector.extract_strided_slice %0 {offsets = [0, 3], sizes = [56, 1], strides = [1, 1]} : vector<56x4xi32> to vector<56x1xi32>
    %c24_i32 = arith.constant 24 : i32
    %18 = vector.broadcast %c24_i32 : i32 to vector<56x1xi32>
    %19 = arith.addi %17, %18 : vector<56x1xi32>
    %20 = vector.broadcast %19 : vector<56x1xi32> to vector<56x32xi32>
    %21 = arith.cmpi eq, %1, %20 : vector<56x32xi32>
    %22 = arith.ori %16, %21 : vector<56x32xi1>
    %23 = arith.extui %22 : vector<56x32xi1> to vector<56x32xi32>
    %24 = arith.sitofp %23 : vector<56x32xi32> to vector<56x32xf32>
    %25 = arith.truncf %24 : vector<56x32xf32> to vector<56x32xbf16>
    %c0_1 = arith.constant 0 : index
    %c0_2 = arith.constant 0 : index
    %26 = vector.load %arg2[%c0_1, %c0_2] : memref<32x16xbf16, #tpu.memory_space<vmem>>, vector<32x16xbf16>
    %cst = arith.constant dense<0.000000e+00> : vector<56x16xf32>
    %27 = tpu.matmul %25, %26, %cst {dimension_numbers = #tpu.dot_dimension_numbers<[1], [0], [0], [1], [0, 0, 1, 1], [], []>} : vector<56x32xbf16>, vector<32x16xbf16>, vector<56x16xf32> -> vector<56x16xf32>
    %c0_3 = arith.constant 0 : index
    %c0_4 = arith.constant 0 : index
    %28 = vector.load %arg3[%c0_3, %c0_4] : memref<1x16xf32, #tpu.memory_space<vmem>>, vector<1x16xf32>
    %29 = vector.broadcast %28 : vector<1x16xf32> to vector<56x16xf32>
    %30 = arith.addf %27, %29 : vector<56x16xf32>
    %cst_5 = arith.constant 0.000000e+00 : f32
    %31 = vector.broadcast %cst_5 : f32 to vector<56x16xf32>
    %32 = arith.maximumf %30, %31 : vector<56x16xf32>
    %33 = arith.truncf %32 : vector<56x16xf32> to vector<56x16xbf16>
    %c0_6 = arith.constant 0 : index
    %c0_7 = arith.constant 0 : index
    %c0_8 = arith.constant 0 : index
    %34 = vector.load %arg4[%c0_6, %c0_7, %c0_8] : memref<2x16x16xbf16, #tpu.memory_space<vmem>>, vector<1x16x16xbf16>
    %35 = vector.shape_cast %34 : vector<1x16x16xbf16> to vector<16x16xbf16>
    %cst_9 = arith.constant dense<0.000000e+00> : vector<56x16xf32>
    %36 = tpu.matmul %33, %35, %cst_9 {dimension_numbers = #tpu.dot_dimension_numbers<[1], [0], [0], [1], [0, 0, 1, 1], [], []>} : vector<56x16xbf16>, vector<16x16xbf16>, vector<56x16xf32> -> vector<56x16xf32>
    %c0_10 = arith.constant 0 : index
    %c0_11 = arith.constant 0 : index
    %c0_12 = arith.constant 0 : index
    %37 = vector.load %arg5[%c0_10, %c0_11, %c0_12] : memref<2x1x16xf32, #tpu.memory_space<vmem>>, vector<1x1x16xf32>
    %38 = vector.shape_cast %37 : vector<1x1x16xf32> to vector<1x16xf32>
    %39 = vector.broadcast %38 : vector<1x16xf32> to vector<56x16xf32>
    %40 = arith.addf %36, %39 : vector<56x16xf32>
    %cst_13 = arith.constant 0.000000e+00 : f32
    %41 = vector.broadcast %cst_13 : f32 to vector<56x16xf32>
    %42 = arith.maximumf %40, %41 : vector<56x16xf32>
    %43 = arith.addf %32, %42 : vector<56x16xf32>
    %44 = arith.truncf %43 : vector<56x16xf32> to vector<56x16xbf16>
    %c1 = arith.constant 1 : index
    %c0_14 = arith.constant 0 : index
    %c0_15 = arith.constant 0 : index
    %45 = vector.load %arg4[%c1, %c0_14, %c0_15] : memref<2x16x16xbf16, #tpu.memory_space<vmem>>, vector<1x16x16xbf16>
    %46 = vector.shape_cast %45 : vector<1x16x16xbf16> to vector<16x16xbf16>
    %cst_16 = arith.constant dense<0.000000e+00> : vector<56x16xf32>
    %47 = tpu.matmul %44, %46, %cst_16 {dimension_numbers = #tpu.dot_dimension_numbers<[1], [0], [0], [1], [0, 0, 1, 1], [], []>} : vector<56x16xbf16>, vector<16x16xbf16>, vector<56x16xf32> -> vector<56x16xf32>
    %c1_17 = arith.constant 1 : index
    %c0_18 = arith.constant 0 : index
    %c0_19 = arith.constant 0 : index
    %48 = vector.load %arg5[%c1_17, %c0_18, %c0_19] : memref<2x1x16xf32, #tpu.memory_space<vmem>>, vector<1x1x16xf32>
    %49 = vector.shape_cast %48 : vector<1x1x16xf32> to vector<1x16xf32>
    %50 = vector.broadcast %49 : vector<1x16xf32> to vector<56x16xf32>
    %51 = arith.addf %47, %50 : vector<56x16xf32>
    %cst_20 = arith.constant 0.000000e+00 : f32
    %52 = vector.broadcast %cst_20 : f32 to vector<56x16xf32>
    %53 = arith.maximumf %51, %52 : vector<56x16xf32>
    %54 = arith.addf %43, %53 : vector<56x16xf32>
    %c0_21 = arith.constant 0 : index
    %c0_22 = arith.constant 0 : index
    %55 = vector.load %arg6[%c0_21, %c0_22] : memref<1x16xbf16, #tpu.memory_space<vmem>>, vector<1x16xbf16>
    %56 = arith.truncf %54 : vector<56x16xf32> to vector<56x16xbf16>
    %cst_23 = arith.constant dense<0.000000e+00> : vector<1x56xf32>
    %57 = tpu.matmul %55, %56, %cst_23 {dimension_numbers = #tpu.dot_dimension_numbers<[1], [1], [0], [0], [0, 0, 1, 0], [], []>} : vector<1x16xbf16>, vector<56x16xbf16>, vector<1x56xf32> -> vector<1x56xf32>
    %c0_24 = arith.constant 0 : index
    %c0_25 = arith.constant 0 : index
    %58 = vector.load %arg7[%c0_24, %c0_25] : memref<1x1xf32, #tpu.memory_space<vmem>>, vector<1x1xf32>
    %59 = vector.broadcast %58 : vector<1x1xf32> to vector<1x56xf32>
    %60 = arith.addf %57, %59 : vector<1x56xf32>
    %c0_26 = arith.constant 0 : index
    %c0_27 = arith.constant 0 : index
    %c0_28 = arith.constant 0 : index
    %61 = vector.load %arg8[%c0_26, %c0_27, %c0_28] : memref<1x1x56xf32, #tpu.memory_space<vmem>>, vector<1x1x56xf32>
    %62 = vector.shape_cast %61 : vector<1x1x56xf32> to vector<1x56xf32>
    %63 = vector.shape_cast %60 : vector<1x56xf32> to vector<1x1x56xf32>
    tpu.vector_store %arg8[%c0_26, %c0_27, %c0_28], %63 {strides = array<i32>} : memref<1x1x56xf32, #tpu.memory_space<vmem>>, vector<1x1x56xf32>,
    return
  }
  func.func @transform_0(%arg0: i32) -> (i32, i32) {
    %c0_i32 = arith.constant 0 : i32
    %c0_i32_0 = arith.constant 0 : i32
    return %arg0, %c0_i32 : i32, i32
  }
  func.func @transform_1(%arg0: i32) -> (i32, i32) {
    %c0_i32 = arith.constant 0 : i32
    %c0_i32_0 = arith.constant 0 : i32
    %c0_i32_1 = arith.constant 0 : i32
    return %c0_i32, %c0_i32_0 : i32, i32
  }
  func.func @transform_2(%arg0: i32) -> (i32, i32) {
    %c0_i32 = arith.constant 0 : i32
    %c0_i32_0 = arith.constant 0 : i32
    %c0_i32_1 = arith.constant 0 : i32
    return %c0_i32, %c0_i32_0 : i32, i32
  }
  func.func @transform_3(%arg0: i32) -> (i32, i32, i32) {
    %c0_i32 = arith.constant 0 : i32
    %c0_i32_0 = arith.constant 0 : i32
    %c0_i32_1 = arith.constant 0 : i32
    %c0_i32_2 = arith.constant 0 : i32
    return %c0_i32, %c0_i32_0, %c0_i32_1 : i32, i32, i32
  }
  func.func @transform_4(%arg0: i32) -> (i32, i32, i32) {
    %c0_i32 = arith.constant 0 : i32
    %c0_i32_0 = arith.constant 0 : i32
    %c0_i32_1 = arith.constant 0 : i32
    %c0_i32_2 = arith.constant 0 : i32
    return %c0_i32, %c0_i32_0, %c0_i32_1 : i32, i32, i32
  }
  func.func @transform_5(%arg0: i32) -> (i32, i32) {
    %c0_i32 = arith.constant 0 : i32
    %c0_i32_0 = arith.constant 0 : i32
    %c0_i32_1 = arith.constant 0 : i32
    return %c0_i32, %c0_i32_0 : i32, i32
  }
  func.func @transform_6(%arg0: i32) -> (i32, i32) {
    %c0_i32 = arith.constant 0 : i32
    %c0_i32_0 = arith.constant 0 : i32
    %c0_i32_1 = arith.constant 0 : i32
    return %c0_i32, %c0_i32_0 : i32, i32
  }
  func.func @transform_7(%arg0: i32) -> (i32, i32, i32) {
    %c0_i32 = arith.constant 0 : i32
    %c0_i32_0 = arith.constant 0 : i32
    %c0_i32_1 = arith.constant 0 : i32
    return %arg0, %c0_i32, %c0_i32_0 : i32, i32, i32
  }
}

</mosaic_0001>

<llo_original>
// kernel: tpu_custom_call.1
$region0: #{tpu_custom_call.1}
  #allocation0 [shape = 'u32[]', space=smem, size = 0x4, offset = 0x4, fixed_abs, tag = 'smem constant byte address 0x4 - core index']
  #allocation1 [shape = 'u32[144,128]{1,0:T(1,128)}', space=vmem, size = 0x12000, scoped, tag = 'internal scratch']
  #allocation2 [shape = 'f32[1,1]{1,0:T(1,128)S(1)}', space=vmem, size = 0x200, scoped, tag = 'scoped memory for tpu_custom_call.1']
  %s0 = inlined_call_operand.vmem [shape: s32[112,4], index: 0, kind: input, shape index: {}]
  %s1 = inlined_call_operand.vmem [shape: bf16[32,16], index: 1, kind: input, shape index: {}]
  %s2 = inlined_call_operand.vmem [shape: f32[1,16], index: 2, kind: input, shape index: {}]
  %s3 = inlined_call_operand.vmem [shape: bf16[2,16,16], index: 3, kind: input, shape index: {}]
  %s4 = inlined_call_operand.vmem [shape: f32[2,1,16], index: 4, kind: input, shape index: {}]
  %s5 = inlined_call_operand.vmem [shape: bf16[1,16], index: 5, kind: input, shape index: {}]
  %s6 = inlined_call_operand.<no memory space> [shape: f32[1,1], index: 6, kind: input, shape index: {}]
  %s7 = inlined_call_operand.hbm [shape: f32[2,1,56], index: 7, kind: output, shape index: {}]
  %s8 = sld [smem:[#allocation0]]
  $region61: #{tpu_custom_call.1} parent=0
    _
  %s10 = ssub.s32 1, %s8
  %s11 = scalar_select 0, %s10, %s8
  %v12 = vstv %s6
  %13 = vst [vmem:[#allocation2] sm:$0x1] %v12
  $region1: #{tpu_custom_call.1} parent=0
    #allocation3 [shape = 'u8[1024]{0}', space=vmem, size = 0x400, scoped, tag = 'output window, operand 0']
    #allocation4 [shape = 's32[2]{0}', space=sflag, size = 0x8, scoped, tag = 'scoped memory for tpu_custom_call.1']
    %14 = vsyncpa [#allocation4], 0
    %s15 = scalar_lea.sflag [#allocation4], 1
    %16 = vsyncpa %s15, 0
    loop: start=0, step=1, limit=4
    $region2: #{tpu_custom_call.1} parent=1 // loop_pre_header
      _
    $region3: #{tpu_custom_call.1} parent=1 // loop_header
      %s18 = sphi 0, %s22
      %p19 = scmp.ge.s32.totalorder %s18, 4
      %s28 = sphi 0, %s30
      %s31 = sphi 0, %s28
      %s32 = sphi 0, %s31
      %s48 = sphi 0, %s32
      %s52 = sphi 0, %s52
      %s54 = sphi 0, %s52
      %s55 = sphi 0, %s54
      %s69 = sphi 0, %s55
      %s73 = sphi 0, %s73
      %s75 = sphi 0, %s73
      %s76 = sphi 0, %s75
      %s90 = sphi 0, %s76
      %s94 = sphi 0, %s94
      %s96 = sphi 0, %s94
      %s97 = sphi 0, %s96
      %s111 = sphi 0, %s97
      %s115 = sphi 0, %s115
      %s117 = sphi 0, %s115
      %s118 = sphi 0, %s117
      %s132 = sphi 0, %s118
      %s136 = sphi 0, %s136
      %s138 = sphi 0, %s136
      %s139 = sphi 0, %s138
      %s153 = sphi 0, %s139
      %s157 = sphi 0, %s157
      %s159 = sphi 0, %s157
      %s160 = sphi 0, %s159
      %s174 = sphi 0, %s160
      %s180 = sphi 0, %s182
      %s183 = sphi 0, %s180
      %s184 = sphi 0, %s183
      %s200 = sphi 0, %s184
    $region4: #{tpu_custom_call.1} parent=1 // loop_header_branch
      %21 = sbr.rel (%p19) target = $region8
    $region5: #{tpu_custom_call.1} parent=1 // loop_body
      %s23 = ssub.s32 %s18, 1
      %s24 = ssub.s32 %s18, 2
      %s25 = sadd.s32 %s18, 1
      %s26 = ssub.s32 %s18, %s25
      %p27 = scmp.eq.s32.totalorder %s26, 0
      %s29 = sadd.s32 %s28, 1
      %s30 = scalar_select %p27, %s28, %s29
      %p33 = pneg %p27
      %p34 = scmp.eq.s32.totalorder %s18, 1
      %p35 = por %p33, %p34
      %p36 = scmp.ne.s32.totalorder %s28, %s31
      %p37 = scmp.eq.s32.totalorder %s18, 0
      %p38 = por %p36, %p37
      %p39 = scmp.ne.s32.totalorder %s28, %s31
      %p40 = scmp.eq.s32.totalorder %s23, 1
      %p41 = por %p39, %p40
      %p42 = scmp.ne.s32.totalorder %s31, %s32
      %p43 = scmp.eq.s32.totalorder %s23, 0
      %p44 = por %p42, %p43
      %p45 = scmp.ne.s32.totalorder %s31, %s32
      %p46 = scmp.eq.s32.totalorder %s24, 1
      %p47 = por %p45, %p46
      %p49 = scmp.ne.s32.totalorder %s32, %s48
      %p50 = scmp.eq.s32.totalorder %s24, 0
      %p51 = por %p49, %p50
      %s53 = sadd.s32 %s52, 1
      %p56 = scmp.eq.s32.totalorder %s18, 1
      %p57 = scmp.ne.s32.totalorder %s52, %s54
      %p58 = scmp.eq.s32.totalorder %s18, 0
      %p59 = por %p57, %p58
      %p60 = scmp.ne.s32.totalorder %s52, %s54
      %p61 = scmp.eq.s32.totalorder %s23, 1
      %p62 = por %p60, %p61
      %p63 = scmp.ne.s32.totalorder %s54, %s55
      %p64 = scmp.eq.s32.totalorder %s23, 0
      %p65 = por %p63, %p64
      %p66 = scmp.ne.s32.totalorder %s54, %s55
      %p67 = scmp.eq.s32.totalorder %s24, 1
      %p68 = por %p66, %p67
      %p70 = scmp.ne.s32.totalorder %s55, %s69
      %p71 = scmp.eq.s32.totalorder %s24, 0
      %p72 = por %p70, %p71
      %s74 = sadd.s32 %s73, 1
      %p77 = scmp.eq.s32.totalorder %s18, 1
      %p78 = scmp.ne.s32.totalorder %s73, %s75
      %p79 = scmp.eq.s32.totalorder %s18, 0
      %p80 = por %p78, %p79
      %p81 = scmp.ne.s32.totalorder %s73, %s75
      %p82 = scmp.eq.s32.totalorder %s23, 1
      %p83 = por %p81, %p82
      %p84 = scmp.ne.s32.totalorder %s75, %s76
      %p85 = scmp.eq.s32.totalorder %s23, 0
      %p86 = por %p84, %p85
      %p87 = scmp.ne.s32.totalorder %s75, %s76
      %p88 = scmp.eq.s32.totalorder %s24, 1
      %p89 = por %p87, %p88
      %p91 = scmp.ne.s32.totalorder %s76, %s90
      %p92 = scmp.eq.s32.totalorder %s24, 0
      %p93 = por %p91, %p92
      %s95 = sadd.s32 %s94, 1
      %p98 = scmp.eq.s32.totalorder %s18, 1
      %p99 = scmp.ne.s32.totalorder %s94, %s96
      %p100 = scmp.eq.s32.totalorder %s18, 0
      %p101 = por %p99, %p100
      %p102 = scmp.ne.s32.totalorder %s94, %s96
      %p103 = scmp.eq.s32.totalorder %s23, 1
      %p104 = por %p102, %p103
      %p105 = scmp.ne.s32.totalorder %s96, %s97
      %p106 = scmp.eq.s32.totalorder %s23, 0
      %p107 = por %p105, %p106
      %p108 = scmp.ne.s32.totalorder %s96, %s97
      %p109 = scmp.eq.s32.totalorder %s24, 1
      %p110 = por %p108, %p109
      %p112 = scmp.ne.s32.totalorder %s97, %s111
      %p113 = scmp.eq.s32.totalorder %s24, 0
      %p114 = por %p112, %p113
      %s116 = sadd.s32 %s115, 1
      %p119 = scmp.eq.s32.totalorder %s18, 1
      %p120 = scmp.ne.s32.totalorder %s115, %s117
      %p121 = scmp.eq.s32.totalorder %s18, 0
      %p122 = por %p120, %p121
      %p123 = scmp.ne.s32.totalorder %s115, %s117
      %p124 = scmp.eq.s32.totalorder %s23, 1
      %p125 = por %p123, %p124
      %p126 = scmp.ne.s32.totalorder %s117, %s118
      %p127 = scmp.eq.s32.totalorder %s23, 0
      %p128 = por %p126, %p127
      %p129 = scmp.ne.s32.totalorder %s117, %s118
      %p130 = scmp.eq.s32.totalorder %s24, 1
      %p131 = por %p129, %p130
      %p133 = scmp.ne.s32.totalorder %s118, %s132
      %p134 = scmp.eq.s32.totalorder %s24, 0
      %p135 = por %p133, %p134
      %s137 = sadd.s32 %s136, 1
      %p140 = scmp.eq.s32.totalorder %s18, 1
      %p141 = scmp.ne.s32.totalorder %s136, %s138
      %p142 = scmp.eq.s32.totalorder %s18, 0
      %p143 = por %p141, %p142
      %p144 = scmp.ne.s32.totalorder %s136, %s138
      %p145 = scmp.eq.s32.totalorder %s23, 1
      %p146 = por %p144, %p145
      %p147 = scmp.ne.s32.totalorder %s138, %s139
      %p148 = scmp.eq.s32.totalorder %s23, 0
      %p149 = por %p147, %p148
      %p150 = scmp.ne.s32.totalorder %s138, %s139
      %p151 = scmp.eq.s32.totalorder %s24, 1
      %p152 = por %p150, %p151
      %p154 = scmp.ne.s32.totalorder %s139, %s153
      %p155 = scmp.eq.s32.totalorder %s24, 0
      %p156 = por %p154, %p155
      %s158 = sadd.s32 %s157, 1
      %p161 = scmp.eq.s32.totalorder %s18, 1
      %p162 = scmp.ne.s32.totalorder %s157, %s159
      %p163 = scmp.eq.s32.totalorder %s18, 0
      %p164 = por %p162, %p163
      %p165 = scmp.ne.s32.totalorder %s157, %s159
      %p166 = scmp.eq.s32.totalorder %s23, 1
      %p167 = por %p165, %p166
      %p168 = scmp.ne.s32.totalorder %s159, %s160
      %p169 = scmp.eq.s32.totalorder %s23, 0
      %p170 = por %p168, %p169
      %p171 = scmp.ne.s32.totalorder %s159, %s160
      %p172 = scmp.eq.s32.totalorder %s24, 1
      %p173 = por %p171, %p172
      %p175 = scmp.ne.s32.totalorder %s160, %s174
      %p176 = scmp.eq.s32.totalorder %s24, 0
      %p177 = por %p175, %p176
      %s178 = ssub.s32 %s18, %s25
      %p179 = scmp.eq.s32.totalorder %s178, 0
      %s181 = sadd.s32 %s180, 1
      %s182 = scalar_select %p179, %s180, %s181
      %p185 = pneg %p179
      %p186 = scmp.eq.s32.totalorder %s18, 1
      %p187 = por %p185, %p186
      %p188 = scmp.ne.s32.totalorder %s180, %s183
      %p189 = scmp.eq.s32.totalorder %s18, 0
      %p190 = por %p188, %p189
      %p191 = scmp.ne.s32.totalorder %s180, %s183
      %p192 = scmp.eq.s32.totalorder %s23, 1
      %p193 = por %p191, %p192
      %p194 = scmp.ne.s32.totalorder %s183, %s184
      %p195 = scmp.eq.s32.totalorder %s23, 0
      %p196 = por %p194, %p195
      %p197 = scmp.ne.s32.totalorder %s183, %s184
      %p198 = scmp.eq.s32.totalorder %s24, 1
      %p199 = por %p197, %p198
      %p201 = scmp.ne.s32.totalorder %s184, %s200
      %p202 = scmp.eq.s32.totalorder %s24, 0
      %p203 = por %p201, %p202
      %p204 = scmp.le.s32.totalorder 1, %s18
      %p205 = scmp.lt.s32.totalorder %s18, 3
      %p206 = pnand %p204, %p205
      %p207 = pneg %p206
      // Predicated region
      $region9: #{tpu_custom_call.1} parent=5 // pred_check
        _
      $region10: #{tpu_custom_call.1} parent=5 // pred_check_branch
        %209 = sbr.rel (%p206) target = $region12
      $region11: #{tpu_custom_call.1} parent=5 // pred_region
        %s210 = ssub.s32 %s18, 1
        // Predicated region
        $region13: #{tpu_custom_call.1} parent=11 // pred_check
          %p211 = pneg %p65
        $region14: #{tpu_custom_call.1} parent=11 // pred_check_branch
          %213 = sbr.rel (%p211) target = $region16
        $region15: #{tpu_custom_call.1} parent=11 // pred_region
          _
        $region16: #{tpu_custom_call.1} parent=11 // pred_fallthru
          _
        // Predicated region
        $region17: #{tpu_custom_call.1} parent=11 // pred_check
          %p214 = pneg %p86
        $region18: #{tpu_custom_call.1} parent=11 // pred_check_branch
          %216 = sbr.rel (%p214) target = $region20
        $region19: #{tpu_custom_call.1} parent=11 // pred_region
          _
        $region20: #{tpu_custom_call.1} parent=11 // pred_fallthru
          _
        // Predicated region
        $region21: #{tpu_custom_call.1} parent=11 // pred_check
          %p217 = pneg %p107
        $region22: #{tpu_custom_call.1} parent=11 // pred_check_branch
          %219 = sbr.rel (%p217) target = $region24
        $region23: #{tpu_custom_call.1} parent=11 // pred_region
          _
        $region24: #{tpu_custom_call.1} parent=11 // pred_fallthru
          _
        // Predicated region
        $region25: #{tpu_custom_call.1} parent=11 // pred_check
          %p220 = pneg %p128
        $region26: #{tpu_custom_call.1} parent=11 // pred_check_branch
          %222 = sbr.rel (%p220) target = $region28
        $region27: #{tpu_custom_call.1} parent=11 // pred_region
          _
        $region28: #{tpu_custom_call.1} parent=11 // pred_fallthru
          _
        // Predicated region
        $region29: #{tpu_custom_call.1} parent=11 // pred_check
          %p223 = pneg %p149
        $region30: #{tpu_custom_call.1} parent=11 // pred_check_branch
          %225 = sbr.rel (%p223) target = $region32
        $region31: #{tpu_custom_call.1} parent=11 // pred_region
          _
        $region32: #{tpu_custom_call.1} parent=11 // pred_fallthru
          _
        // Predicated region
        $region33: #{tpu_custom_call.1} parent=11 // pred_check
          %p226 = pneg %p170
        $region34: #{tpu_custom_call.1} parent=11 // pred_check_branch
          %228 = sbr.rel (%p226) target = $region36
        $region35: #{tpu_custom_call.1} parent=11 // pred_region
          _
        $region36: #{tpu_custom_call.1} parent=11 // pred_fallthru
          _
      $region12: #{tpu_custom_call.1} parent=5 // pred_fallthru
        _
      %p229 = scmp.lt.s32.totalorder %s18, 2
      // Predicated region
      $region37: #{tpu_custom_call.1} parent=5 // pred_check
        %p230 = pneg %p229
      $region38: #{tpu_custom_call.1} parent=5 // pred_check_branch
        %232 = sbr.rel (%p230) target = $region40
      $region39: #{tpu_custom_call.1} parent=5 // pred_region
        // Predicated region
        $region41: #{tpu_custom_call.1} parent=39 // pred_check
          %p233 = pneg %p38
        $region42: #{tpu_custom_call.1} parent=39 // pred_check_branch
          %235 = sbr.rel (%p233) target = $region44
        $region43: #{tpu_custom_call.1} parent=39 // pred_region
          %s236 = smul.u32 7, %s18
          %p237 = scmp.lt.s32.totalorder %s236, 13
          %s238 = scalar_select %p237, %s236, 13
          %s239 = smul.addr %s238, 8
          %s240 = scalar_lea.vmem %s0, %s239
          %s241 = smul.u32 7, %s18
        $region44: #{tpu_custom_call.1} parent=39 // pred_fallthru
          _
      $region40: #{tpu_custom_call.1} parent=5 // pred_fallthru
        _
      %p242 = scmp.le.s32.totalorder 1, %s18
      %p243 = scmp.lt.s32.totalorder %s18, 3
      %p244 = pnand %p242, %p243
      %p245 = pneg %p244
      // Predicated region
      $region45: #{tpu_custom_call.1} parent=5 // pred_check
        _
      $region46: #{tpu_custom_call.1} parent=5 // pred_check_branch
        %247 = sbr.rel (%p244) target = $region48
      $region47: #{tpu_custom_call.1} parent=5 // pred_region
        %s248 = ssub.s32 %s18, 1
        %s249 = smul.u32 7, %s23
        %p250 = scmp.lt.s32.totalorder %s249, 13
        %s251 = scalar_select %p250, %s249, 13
        %s252 = smul.addr %s251, 8
        %s253 = scalar_lea.vmem %s0, %s252
        %p254 = pneg %p44
        %p255 = pneg %p41
        %p256 = pneg %p65
        %p257 = pneg %p62
        %p258 = pneg %p86
        %p259 = pneg %p83
        %p260 = pneg %p107
        %p261 = pneg %p104
        %p262 = pneg %p128
        %p263 = pneg %p125
        %p264 = pneg %p149
        %p265 = pneg %p146
        %p266 = pneg %p170
        %p267 = pneg %p167
        %p268 = pneg %p196
        %p269 = pneg %p193
        %s270 = sand.u32 %s183, 1
        %s271 = scalar_lea.sflag [#allocation4], %s270
        %s272 = sand.u32 %s183, 1
        %s273 = scalar_lea.vmem [#allocation3], %s272
        %s274 = smul.u32 7, %s23
        %p275 = scmp.lt.s32.totalorder %s274, 13
        %s276 = scalar_select %p275, %s274, 13
        %s277 = smul.addr %s276, 8
        %s278 = scalar_lea.vmem %s0, %s277
        %s279 = smul.u32 7, %s23
        %v281 = vld [vmem:[%s278] sm:$0xff]
        %v282 = vld [vmem:[%s278 + $0x8] sm:$0xff]
        %v283 = vld [vmem:[%s278 + $0x10] sm:$0xff]
        %v284 = vld [vmem:[%s278 + $0x18] sm:$0xff]
        %v285 = vld [vmem:[%s278 + $0x20] sm:$0xff]
        %v286 = vld [vmem:[%s278 + $0x28] sm:$0xff]
        %v287 = vld [vmem:[%s278 + $0x30] sm:$0xff]
        %v288 = vlaneseq
        %v289 = vand.u32 %v288, 127
        %290 = vset.pattern.permute.xlu0 0
        %291 = vperm.xlu0 %290, %v281
        %v292 = vpop.permute.xlu0 %291
        %293 = vset.pattern.permute.xlu0 0
        %294 = vperm.xlu0 %293, %v282
        %v295 = vpop.permute.xlu0 %294
        %296 = vset.pattern.permute.xlu0 0
        %297 = vperm.xlu0 %296, %v283
        %v298 = vpop.permute.xlu0 %297
        %299 = vset.pattern.permute.xlu0 0
        %300 = vperm.xlu0 %299, %v284
        %v301 = vpop.permute.xlu0 %300
        %302 = vset.pattern.permute.xlu0 0
        %303 = vperm.xlu0 %302, %v285
        %v304 = vpop.permute.xlu0 %303
        %305 = vset.pattern.permute.xlu0 0
        %306 = vperm.xlu0 %305, %v286
        %v307 = vpop.permute.xlu0 %306
        %308 = vset.pattern.permute.xlu0 0
        %309 = vperm.xlu0 %308, %v287
        %v310 = vpop.permute.xlu0 %309
        %vm311 = vcmp.eq.s32.totalorder %v289, %v292
        %vm312 = vcmp.eq.s32.totalorder %v289, %v295
        %vm313 = vcmp.eq.s32.totalorder %v289, %v298
        %vm314 = vcmp.eq.s32.totalorder %v289, %v301
        %vm315 = vcmp.eq.s32.totalorder %v289, %v304
        %vm316 = vcmp.eq.s32.totalorder %v289, %v307
        %vm317 = vcmp.eq.s32.totalorder %v289, %v310
        %v318 = vadd.s32 %v281, 8
        %v319 = vadd.s32 %v282, 8
        %v320 = vadd.s32 %v283, 8
        %v321 = vadd.s32 %v284, 8
        %v322 = vadd.s32 %v285, 8
        %v323 = vadd.s32 %v286, 8
        %v324 = vadd.s32 %v287, 8
        %325 = vset.pattern.permute.xlu0 1
        %326 = vperm.xlu0 %325, %v318
        %v327 = vpop.permute.xlu0 %326
        %328 = vset.pattern.permute.xlu0 1
        %329 = vperm.xlu0 %328, %v319
        %v330 = vpop.permute.xlu0 %329
        %331 = vset.pattern.permute.xlu0 1
        %332 = vperm.xlu0 %331, %v320
        %v333 = vpop.permute.xlu0 %332
        %334 = vset.pattern.permute.xlu0 1
        %335 = vperm.xlu0 %334, %v321
        %v336 = vpop.permute.xlu0 %335
        %337 = vset.pattern.permute.xlu0 1
        %338 = vperm.xlu0 %337, %v322
        %v339 = vpop.permute.xlu0 %338
        %340 = vset.pattern.permute.xlu0 1
        %341 = vperm.xlu0 %340, %v323
        %v342 = vpop.permute.xlu0 %341
        %343 = vset.pattern.permute.xlu0 1
        %344 = vperm.xlu0 %343, %v324
        %v345 = vpop.permute.xlu0 %344
        %vm346 = vcmp.eq.s32.totalorder %v289, %v327
        %vm347 = vcmp.eq.s32.totalorder %v289, %v330
        %vm348 = vcmp.eq.s32.totalorder %v289, %v333
        %vm349 = vcmp.eq.s32.totalorder %v289, %v336
        %vm350 = vcmp.eq.s32.totalorder %v289, %v339
        %vm351 = vcmp.eq.s32.totalorder %v289, %v342
        %vm352 = vcmp.eq.s32.totalorder %v289, %v345
        %vm353 = vmor %vm311, %vm346
        %vm354 = vmor %vm312, %vm347
        %vm355 = vmor %vm313, %vm348
        %vm356 = vmor %vm314, %vm349
        %vm357 = vmor %vm315, %vm350
        %vm358 = vmor %vm316, %vm351
        %vm359 = vmor %vm317, %vm352
        %v360 = vadd.s32 %v281, 16
        %v361 = vadd.s32 %v282, 16
        %v362 = vadd.s32 %v283, 16
        %v363 = vadd.s32 %v284, 16
        %v364 = vadd.s32 %v285, 16
        %v365 = vadd.s32 %v286, 16
        %v366 = vadd.s32 %v287, 16
        %367 = vset.pattern.permute.xlu0 2
        %368 = vperm.xlu0 %367, %v360
        %v369 = vpop.permute.xlu0 %368
        %370 = vset.pattern.permute.xlu0 2
        %371 = vperm.xlu0 %370, %v361
        %v372 = vpop.permute.xlu0 %371
        %373 = vset.pattern.permute.xlu0 2
        %374 = vperm.xlu0 %373, %v362
        %v375 = vpop.permute.xlu0 %374
        %376 = vset.pattern.permute.xlu0 2
        %377 = vperm.xlu0 %376, %v363
        %v378 = vpop.permute.xlu0 %377
        %379 = vset.pattern.permute.xlu0 2
        %380 = vperm.xlu0 %379, %v364
        %v381 = vpop.permute.xlu0 %380
        %382 = vset.pattern.permute.xlu0 2
        %383 = vperm.xlu0 %382, %v365
        %v384 = vpop.permute.xlu0 %383
        %385 = vset.pattern.permute.xlu0 2
        %386 = vperm.xlu0 %385, %v366
        %v387 = vpop.permute.xlu0 %386
        %vm388 = vcmp.eq.s32.totalorder %v289, %v369
        %vm389 = vcmp.eq.s32.totalorder %v289, %v372
        %vm390 = vcmp.eq.s32.totalorder %v289, %v375
        %vm391 = vcmp.eq.s32.totalorder %v289, %v378
        %vm392 = vcmp.eq.s32.totalorder %v289, %v381
        %vm393 = vcmp.eq.s32.totalorder %v289, %v384
        %vm394 = vcmp.eq.s32.totalorder %v289, %v387
        %vm395 = vmor %vm353, %vm388
        %vm396 = vmor %vm354, %vm389
        %vm397 = vmor %vm355, %vm390
        %vm398 = vmor %vm356, %vm391
        %vm399 = vmor %vm357, %vm392
        %vm400 = vmor %vm358, %vm393
        %vm401 = vmor %vm359, %vm394
        %v402 = vadd.s32 %v281, 24
        %v403 = vadd.s32 %v282, 24
        %v404 = vadd.s32 %v283, 24
        %v405 = vadd.s32 %v284, 24
        %v406 = vadd.s32 %v285, 24
        %v407 = vadd.s32 %v286, 24
        %v408 = vadd.s32 %v287, 24
        %409 = vset.pattern.permute.xlu0 3
        %410 = vperm.xlu0 %409, %v402
        %v411 = vpop.permute.xlu0 %410
        %412 = vset.pattern.permute.xlu0 3
        %413 = vperm.xlu0 %412, %v403
        %v414 = vpop.permute.xlu0 %413
        %415 = vset.pattern.permute.xlu0 3
        %416 = vperm.xlu0 %415, %v404
        %v417 = vpop.permute.xlu0 %416
        %418 = vset.pattern.permute.xlu0 3
        %419 = vperm.xlu0 %418, %v405
        %v420 = vpop.permute.xlu0 %419
        %421 = vset.pattern.permute.xlu0 3
        %422 = vperm.xlu0 %421, %v406
        %v423 = vpop.permute.xlu0 %422
        %424 = vset.pattern.permute.xlu0 3
        %425 = vperm.xlu0 %424, %v407
        %v426 = vpop.permute.xlu0 %425
        %427 = vset.pattern.permute.xlu0 3
        %428 = vperm.xlu0 %427, %v408
        %v429 = vpop.permute.xlu0 %428
        %vm430 = vcmp.eq.s32.totalorder %v289, %v411
        %vm431 = vcmp.eq.s32.totalorder %v289, %v414
        %vm432 = vcmp.eq.s32.totalorder %v289, %v417
        %vm433 = vcmp.eq.s32.totalorder %v289, %v420
        %vm434 = vcmp.eq.s32.totalorder %v289, %v423
        %vm435 = vcmp.eq.s32.totalorder %v289, %v426
        %vm436 = vcmp.eq.s32.totalorder %v289, %v429
        %vm437 = vmor %vm395, %vm430
        %vm438 = vmor %vm396, %vm431
        %vm439 = vmor %vm397, %vm432
        %vm440 = vmor %vm398, %vm433
        %vm441 = vmor %vm399, %vm434
        %vm442 = vmor %vm400, %vm435
        %vm443 = vmor %vm401, %vm436
        %v444 = vsel %vm437, 1, 0
        %v445 = vsel %vm438, 1, 0
        %v446 = vsel %vm439, 1, 0
        %v447 = vsel %vm440, 1, 0
        %v448 = vsel %vm441, 1, 0
        %v449 = vsel %vm442, 1, 0
        %v450 = vsel %vm443, 1, 0
        %v451 = vcvt.s32.f32 %v444
        %v452 = vcvt.s32.f32 %v445
        %v453 = vcvt.s32.f32 %v446
        %v454 = vcvt.s32.f32 %v447
        %v455 = vcvt.s32.f32 %v448
        %v456 = vcvt.s32.f32 %v449
        %v457 = vcvt.s32.f32 %v450
        %v458 = vpack.c.bf16 %v452, %v451
        %v459 = vpack.c.bf16 %v454, %v453
        %v460 = vpack.c.bf16 %v456, %v455
        %v461 = vpack.c.bf16 %v457, %v457
        %v462 = vld [vmem:[%s1] sm:$0xf]
        %v463 = vld [vmem:[%s1 + $0x4] sm:$0xf]
        %v464 = vld [vmem:[%s1 + $0x8] sm:$0xf]
        %v465 = vld [vmem:[%s1 + $0xc] sm:$0xf]
        %v466 = vld [vmem:[%s2] sm:$0x1]
        %v468 = vlaneseq
        %v469 = vshrl.u32 %v468, 7
        %v470 = vsub.s32 0, %v469
        %v471 = vrot.slane %v466, %v470
        %v477 = vunpack.c.l.b16 %v462
        %v478 = vunpack.c.l.b16 %v463
        %v479 = vunpack.c.l.b16 %v464
        %v480 = vunpack.c.l.b16 %v465
        %v481 = vpack.c.b16 %v478, %v477
        %v482 = vpack.c.b16 %v480, %v479
        %vm485 = vcmask 261120
        %v487 = vsel %vm485, %v458, 0
        %v490 = vsel %vm485, %v459, 0
        %v493 = vsel %vm485, %v460, 0
        %v496 = vsel %vm485, %v461, 0
        %498 = vmatprep.subr.bf16.mxu0 0
        %499 = vmatpush1.bf16.msra.mxu0 %v481
        %500 = vmatprep.subr.bf16.mxu0 0
        %501 = vmatpush1.bf16.msra.mxu0 %v482
        %502 = vmatprep.subr.bf16.mxu0 0
        %503 = vmatpush1.bf16.msra.mxu0 0
        %504 = vmatprep.subr.bf16.mxu0 0
        %505 = vmatpush1.bf16.msra.mxu0 0
        %506 = vmatprep.subr.bf16.mxu0 0
        %507 = vmatpush1.bf16.msra.mxu0 0
        %508 = vmatprep.subr.bf16.mxu0 0
        %509 = vmatpush1.bf16.msra.mxu0 0
        %510 = vmatprep.subr.bf16.mxu0 0
        %511 = vmatpush1.bf16.msra.mxu0 0
        %512 = vmatprep.subr.bf16.mxu0 0
        %513 = vmatpush1.bf16.msra.mxu0 0
        %514 = vmatprep.subr.bf16.mxu0 0
        %515 = vmatpush1.bf16.msra.mxu0 0
        %516 = vmatprep.subr.bf16.mxu0 0
        %517 = vmatpush1.bf16.msra.mxu0 0
        %518 = vmatprep.subr.bf16.mxu0 0
        %519 = vmatpush1.bf16.msra.mxu0 0
        %520 = vmatprep.subr.bf16.mxu0 0
        %521 = vmatpush1.bf16.msra.mxu0 0
        %522 = vmatprep.subr.bf16.mxu0 0
        %523 = vmatpush1.bf16.msra.mxu0 0
        %524 = vmatprep.subr.bf16.mxu0 0
        %525 = vmatpush1.bf16.msra.mxu0 0
        %526 = vmatprep.subr.bf16.mxu0 0
        %527 = vmatpush1.bf16.msra.mxu0 0
        %528 = vmatprep.subr.bf16.mxu0 0
        %529 = vmatpush1.bf16.msra.mxu0 0
        %530 = vmatprep.mubr.bf16.mxu0 0
        %531 = vmatmul.mubr.bf16.gmra.mrb[0].mxu0 %v487
        %v532 = vpop.f32.mrb[0].mxu0
        %v533 = vadd.f32 %v471, %v532
        %v534 = vpop.f32.mrb[0].mxu0
        %v535 = vpop.f32.mrb[0].mxu0
        %v536 = vadd.f32 %v471, %v535
        %v537 = vpop.f32.mrb[0].mxu0
        %538 = vmatprep.mubr.bf16.mxu0 0
        %539 = vmatmul.mubr.bf16.gmra.mrb[0].mxu0 %v490
        %v540 = vpop.f32.mrb[0].mxu0
        %v541 = vadd.f32 %v471, %v540
        %v542 = vpop.f32.mrb[0].mxu0
        %v543 = vpop.f32.mrb[0].mxu0
        %v544 = vadd.f32 %v471, %v543
        %v545 = vpop.f32.mrb[0].mxu0
        %546 = vmatprep.mubr.bf16.mxu0 0
        %547 = vmatmul.mubr.bf16.gmra.mrb[0].mxu0 %v493
        %v548 = vpop.f32.mrb[0].mxu0
        %v549 = vadd.f32 %v471, %v548
        %v550 = vpop.f32.mrb[0].mxu0
        %v551 = vpop.f32.mrb[0].mxu0
        %v552 = vadd.f32 %v471, %v551
        %v553 = vpop.f32.mrb[0].mxu0
        %554 = vmatprep.mubr.bf16.mxu0 0
        %555 = vmatmul.mubr.bf16.gmra.mrb[0].mxu0 %v496
        %v556 = vpop.f32.mrb[0].mxu0
        %v557 = vadd.f32 %v471, %v556
        %v558 = vpop.f32.mrb[0].mxu0
        %v559 = vpop.f32.mrb[0].mxu0
        %v560 = vpop.f32.mrb[0].mxu0
        %561 = vdwg.mxu0
        %v562 = vmax.f32 %v533, 0.0
        %v563 = vmax.f32 %v536, 0.0
        %v564 = vmax.f32 %v541, 0.0
        %v565 = vmax.f32 %v544, 0.0
        %v566 = vmax.f32 %v549, 0.0
        %v567 = vmax.f32 %v552, 0.0
        %v568 = vmax.f32 %v557, 0.0
        %v569 = vpack.c.bf16 %v563, %v562
        %v570 = vpack.c.bf16 %v565, %v564
        %v571 = vpack.c.bf16 %v567, %v566
        %v572 = vpack.c.bf16 %v568, %v568
        %v573 = vld [vmem:[%s3] sm:$0xf]
        %v574 = vld [vmem:[%s3 + $0x4] sm:$0xf]
        %v575 = vld [vmem:[%s4] sm:$0x1]
        %v577 = vlaneseq
        %v578 = vshrl.u32 %v577, 7
        %v579 = vsub.s32 0, %v578
        %v580 = vrot.slane %v575, %v579
        %v584 = vunpack.c.l.b16 %v573
        %v585 = vunpack.c.l.b16 %v574
        %v586 = vpack.c.b16 %v585, %v584
        %vm588 = vcmask 130048
        %v590 = vsel %vm588, %v569, 0
        %v593 = vsel %vm588, %v570, 0
        %v596 = vsel %vm588, %v571, 0
        %v599 = vsel %vm588, %v572, 0
        %601 = vmatprep.subr.bf16.mxu0 0
        %602 = vmatpush1.bf16.msra.mxu0 %v586
        %603 = vmatprep.subr.bf16.mxu0 0
        %604 = vmatpush1.bf16.msra.mxu0 0
        %605 = vmatprep.subr.bf16.mxu0 0
        %606 = vmatpush1.bf16.msra.mxu0 0
        %607 = vmatprep.subr.bf16.mxu0 0
        %608 = vmatpush1.bf16.msra.mxu0 0
        %609 = vmatprep.subr.bf16.mxu0 0
        %610 = vmatpush1.bf16.msra.mxu0 0
        %611 = vmatprep.subr.bf16.mxu0 0
        %612 = vmatpush1.bf16.msra.mxu0 0
        %613 = vmatprep.subr.bf16.mxu0 0
        %614 = vmatpush1.bf16.msra.mxu0 0
        %615 = vmatprep.subr.bf16.mxu0 0
        %616 = vmatpush1.bf16.msra.mxu0 0
        %617 = vmatprep.subr.bf16.mxu0 0
        %618 = vmatpush1.bf16.msra.mxu0 0
        %619 = vmatprep.subr.bf16.mxu0 0
        %620 = vmatpush1.bf16.msra.mxu0 0
        %621 = vmatprep.subr.bf16.mxu0 0
        %622 = vmatpush1.bf16.msra.mxu0 0
        %623 = vmatprep.subr.bf16.mxu0 0
        %624 = vmatpush1.bf16.msra.mxu0 0
        %625 = vmatprep.subr.bf16.mxu0 0
        %626 = vmatpush1.bf16.msra.mxu0 0
        %627 = vmatprep.subr.bf16.mxu0 0
        %628 = vmatpush1.bf16.msra.mxu0 0
        %629 = vmatprep.subr.bf16.mxu0 0
        %630 = vmatpush1.bf16.msra.mxu0 0
        %631 = vmatprep.subr.bf16.mxu0 0
        %632 = vmatpush1.bf16.msra.mxu0 0
        %633 = vmatprep.mubr.bf16.mxu0 0
        %634 = vmatmul.mubr.bf16.gmra.mrb[0].mxu0 %v590
        %v635 = vpop.f32.mrb[0].mxu0
        %v636 = vadd.f32 %v580, %v635
        %v637 = vpop.f32.mrb[0].mxu0
        %v638 = vpop.f32.mrb[0].mxu0
        %v639 = vadd.f32 %v580, %v638
        %v640 = vpop.f32.mrb[0].mxu0
        %641 = vmatprep.mubr.bf16.mxu0 0
        %642 = vmatmul.mubr.bf16.gmra.mrb[0].mxu0 %v593
        %v643 = vpop.f32.mrb[0].mxu0
        %v644 = vadd.f32 %v580, %v643
        %v645 = vpop.f32.mrb[0].mxu0
        %v646 = vpop.f32.mrb[0].mxu0
        %v647 = vadd.f32 %v580, %v646
        %v648 = vpop.f32.mrb[0].mxu0
        %649 = vmatprep.mubr.bf16.mxu0 0
        %650 = vmatmul.mubr.bf16.gmra.mrb[0].mxu0 %v596
        %v651 = vpop.f32.mrb[0].mxu0
        %v652 = vadd.f32 %v580, %v651
        %v653 = vpop.f32.mrb[0].mxu0
        %v654 = vpop.f32.mrb[0].mxu0
        %v655 = vadd.f32 %v580, %v654
        %v656 = vpop.f32.mrb[0].mxu0
        %657 = vmatprep.mubr.bf16.mxu0 0
        %658 = vmatmul.mubr.bf16.gmra.mrb[0].mxu0 %v599
        %v659 = vpop.f32.mrb[0].mxu0
        %v660 = vadd.f32 %v580, %v659
        %v661 = vpop.f32.mrb[0].mxu0
        %v662 = vpop.f32.mrb[0].mxu0
        %v663 = vpop.f32.mrb[0].mxu0
        %664 = vdwg.mxu0
        %v665 = vmax.f32 %v636, 0.0
        %v666 = vmax.f32 %v639, 0.0
        %v667 = vmax.f32 %v644, 0.0
        %v668 = vmax.f32 %v647, 0.0
        %v669 = vmax.f32 %v652, 0.0
        %v670 = vmax.f32 %v655, 0.0
        %v671 = vmax.f32 %v660, 0.0
        %v672 = vadd.f32 %v562, %v665
        %v673 = vadd.f32 %v563, %v666
        %v674 = vadd.f32 %v564, %v667
        %v675 = vadd.f32 %v565, %v668
        %v676 = vadd.f32 %v566, %v669
        %v677 = vadd.f32 %v567, %v670
        %v678 = vadd.f32 %v568, %v671
        %v679 = vpack.c.bf16 %v673, %v672
        %v680 = vpack.c.bf16 %v675, %v674
        %v681 = vpack.c.bf16 %v677, %v676
        %v682 = vpack.c.bf16 %v678, %v678
        %s683 = scalar_lea.vmem %s3, 8
        %v684 = vld [vmem:[%s683] sm:$0xf]
        %v685 = vld [vmem:[%s683 + $0x4] sm:$0xf]
        %s686 = scalar_lea.vmem %s4, 1
        %v687 = vld [vmem:[%s686] sm:$0x1]
        %v689 = vlaneseq
        %v690 = vshrl.u32 %v689, 7
        %v691 = vsub.s32 0, %v690
        %v692 = vrot.slane %v687, %v691
        %v696 = vunpack.c.l.b16 %v684
        %v697 = vunpack.c.l.b16 %v685
        %v698 = vpack.c.b16 %v697, %v696
        %v701 = vsel %vm588, %v679, 0
        %v704 = vsel %vm588, %v680, 0
        %v707 = vsel %vm588, %v681, 0
        %v710 = vsel %vm588, %v682, 0
        %712 = vmatprep.subr.bf16.mxu0 0
        %713 = vmatpush1.bf16.msra.mxu0 %v698
        %714 = vmatprep.subr.bf16.mxu0 0
        %715 = vmatpush1.bf16.msra.mxu0 0
        %716 = vmatprep.subr.bf16.mxu0 0
        %717 = vmatpush1.bf16.msra.mxu0 0
        %718 = vmatprep.subr.bf16.mxu0 0
        %719 = vmatpush1.bf16.msra.mxu0 0
        %720 = vmatprep.subr.bf16.mxu0 0
        %721 = vmatpush1.bf16.msra.mxu0 0
        %722 = vmatprep.subr.bf16.mxu0 0
        %723 = vmatpush1.bf16.msra.mxu0 0
        %724 = vmatprep.subr.bf16.mxu0 0
        %725 = vmatpush1.bf16.msra.mxu0 0
        %726 = vmatprep.subr.bf16.mxu0 0
        %727 = vmatpush1.bf16.msra.mxu0 0
        %728 = vmatprep.subr.bf16.mxu0 0
        %729 = vmatpush1.bf16.msra.mxu0 0
        %730 = vmatprep.subr.bf16.mxu0 0
        %731 = vmatpush1.bf16.msra.mxu0 0
        %732 = vmatprep.subr.bf16.mxu0 0
        %733 = vmatpush1.bf16.msra.mxu0 0
        %734 = vmatprep.subr.bf16.mxu0 0
        %735 = vmatpush1.bf16.msra.mxu0 0
        %736 = vmatprep.subr.bf16.mxu0 0
        %737 = vmatpush1.bf16.msra.mxu0 0
        %738 = vmatprep.subr.bf16.mxu0 0
        %739 = vmatpush1.bf16.msra.mxu0 0
        %740 = vmatprep.subr.bf16.mxu0 0
        %741 = vmatpush1.bf16.msra.mxu0 0
        %742 = vmatprep.subr.bf16.mxu0 0
        %743 = vmatpush1.bf16.msra.mxu0 0
        %744 = vmatprep.mubr.bf16.mxu0 0
        %745 = vmatmul.mubr.bf16.gmra.mrb[0].mxu0 %v701
        %v746 = vpop.f32.mrb[0].mxu0
        %v747 = vadd.f32 %v692, %v746
        %v748 = vpop.f32.mrb[0].mxu0
        %v749 = vpop.f32.mrb[0].mxu0
        %v750 = vadd.f32 %v692, %v749
        %v751 = vpop.f32.mrb[0].mxu0
        %752 = vmatprep.mubr.bf16.mxu0 0
        %753 = vmatmul.mubr.bf16.gmra.mrb[0].mxu0 %v704
        %v754 = vpop.f32.mrb[0].mxu0
        %v755 = vadd.f32 %v692, %v754
        %v756 = vpop.f32.mrb[0].mxu0
        %v757 = vpop.f32.mrb[0].mxu0
        %v758 = vadd.f32 %v692, %v757
        %v759 = vpop.f32.mrb[0].mxu0
        %760 = vmatprep.mubr.bf16.mxu0 0
        %761 = vmatmul.mubr.bf16.gmra.mrb[0].mxu0 %v707
        %v762 = vpop.f32.mrb[0].mxu0
        %v763 = vadd.f32 %v692, %v762
        %v764 = vpop.f32.mrb[0].mxu0
        %v765 = vpop.f32.mrb[0].mxu0
        %v766 = vadd.f32 %v692, %v765
        %v767 = vpop.f32.mrb[0].mxu0
        %768 = vmatprep.mubr.bf16.mxu0 0
        %769 = vmatmul.mubr.bf16.gmra.mrb[0].mxu0 %v710
        %v770 = vpop.f32.mrb[0].mxu0
        %v771 = vadd.f32 %v692, %v770
        %v772 = vpop.f32.mrb[0].mxu0
        %v773 = vpop.f32.mrb[0].mxu0
        %v774 = vpop.f32.mrb[0].mxu0
        %775 = vdwg.mxu0
        %v776 = vmax.f32 %v747, 0.0
        %v777 = vmax.f32 %v750, 0.0
        %v778 = vmax.f32 %v755, 0.0
        %v779 = vmax.f32 %v758, 0.0
        %v780 = vmax.f32 %v763, 0.0
        %v781 = vmax.f32 %v766, 0.0
        %v782 = vmax.f32 %v771, 0.0
        %v783 = vadd.f32 %v672, %v776
        %v784 = vadd.f32 %v673, %v777
        %v785 = vadd.f32 %v674, %v778
        %v786 = vadd.f32 %v675, %v779
        %v787 = vadd.f32 %v676, %v780
        %v788 = vadd.f32 %v677, %v781
        %v789 = vadd.f32 %v678, %v782
        %v790 = vld [vmem:[%s5] sm:$0x1]
        %v791 = vpack.c.bf16 %v784, %v783
        %v792 = vpack.c.bf16 %v786, %v785
        %v793 = vpack.c.bf16 %v788, %v787
        %v794 = vpack.c.bf16 %v789, %v789
        %v795 = vld [vmem:[#allocation2] sm:$0x1]
        %797 = vset.pattern.permute.xlu0 0
        %798 = vperm.xlu0 %797, %v795
        %v799 = vpop.permute.xlu0 %798
        %v801 = vlaneseq
        %v802 = vshrl.u32 %v801, 7
        %v803 = vsub.s32 0, %v802
        %v804 = vrot.slane %v799, %v803
        %v806 = vsel %vm588, %v790, 0
        %v809 = vsel %vm588, %v791, 0
        %v812 = vsel %vm588, %v792, 0
        %v815 = vsel %vm588, %v793, 0
        %v818 = vsel %vm588, %v794, 0
        %820 = vmatprep.subr.bf16.mxu0 0
        %821 = vmatpush1.bf16.xpose.msra.mxu0 %v809
        %822 = vmatprep.subr.bf16.mxu0 0
        %823 = vmatpush1.bf16.xpose.msra.mxu0 %v812
        %824 = vmatprep.subr.bf16.mxu0 0
        %825 = vmatpush1.bf16.xpose.msra.mxu0 %v815
        %826 = vmatprep.subr.bf16.mxu0 0
        %827 = vmatpush1.bf16.xpose.msra.mxu0 %v818
        %828 = vmatprep.subr.bf16.mxu0 0
        %829 = vmatpush1.bf16.xpose.msra.mxu0 0
        %830 = vmatprep.subr.bf16.mxu0 0
        %831 = vmatpush1.bf16.xpose.msra.mxu0 0
        %832 = vmatprep.subr.bf16.mxu0 0
        %833 = vmatpush1.bf16.xpose.msra.mxu0 0
        %834 = vmatprep.subr.bf16.mxu0 0
        %835 = vmatpush1.bf16.xpose.msra.mxu0 0
        %836 = vmatprep.subr.bf16.mxu0 0
        %837 = vmatpush1.bf16.xpose.msra.mxu0 0
        %838 = vmatprep.subr.bf16.mxu0 0
        %839 = vmatpush1.bf16.xpose.msra.mxu0 0
        %840 = vmatprep.subr.bf16.mxu0 0
        %841 = vmatpush1.bf16.xpose.msra.mxu0 0
        %842 = vmatprep.subr.bf16.mxu0 0
        %843 = vmatpush1.bf16.xpose.msra.mxu0 0
        %844 = vmatprep.subr.bf16.mxu0 0
        %845 = vmatpush1.bf16.xpose.msra.mxu0 0
        %846 = vmatprep.subr.bf16.mxu0 0
        %847 = vmatpush1.bf16.xpose.msra.mxu0 0
        %848 = vmatprep.subr.bf16.mxu0 0
        %849 = vmatpush1.bf16.xpose.msra.mxu0 0
        %850 = vmatprep.subr.bf16.mxu0 0
        %851 = vmatpush1.bf16.xpose.msra.mxu0 0
        %852 = vmatprep.mubr.bf16.mxu0 0
        %853 = vmatmul.mubr.bf16.gmra.mrb[0].mxu0 %v806
        %v854 = vpop.f32.mrb[0].mxu0
        %v855 = vadd.f32 %v804, %v854
        %v856 = vpop.f32.mrb[0].mxu0
        %v857 = vpop.f32.mrb[0].mxu0
        %v858 = vpop.f32.mrb[0].mxu0
        %859 = vdwg.mxu0
        %vm860 = vcmask 450560
        %861 = vst.msk [vmem:[%s273] sm:$0x1] %vm860, %v855
        %s862 = sand.u32 %s183, 1
        %s863 = scalar_lea.sflag [#allocation4], %s862
        %s864 = sand.u32 %s183, 1
        %s865 = scalar_lea.vmem [#allocation3], %s864
        // Predicated region
        $region49: #{tpu_custom_call.1} parent=47 // pred_check
          %p866 = pneg %p193
        $region50: #{tpu_custom_call.1} parent=47 // pred_check_branch
          %868 = sbr.rel (%p866) target = $region52
        $region51: #{tpu_custom_call.1} parent=47 // pred_region
          %s870 = ssub.s32 16, 16
          %871 = vsyncadd %s863, %s870
          %s872 = smul.addr %s23, 16
          %s873 = scalar_lea.hbm %s7, %s872
          %s875 = sshll.u32 %s865, 4
          %s876 = int_to_ptr.vmem [resolvable:$true] %s875
          %878 = dma.vmem_to_hbm [thread:$0]  %s876, 16, %s873, %s863
        $region52: #{tpu_custom_call.1} parent=47 // pred_fallthru
          _
      $region48: #{tpu_custom_call.1} parent=5 // pred_fallthru
        _
      %p879 = scmp.le.s32.totalorder 2, %s18
      // Predicated region
      $region53: #{tpu_custom_call.1} parent=5 // pred_check
        %p880 = pneg %p879
      $region54: #{tpu_custom_call.1} parent=5 // pred_check_branch
        %882 = sbr.rel (%p880) target = $region56
      $region55: #{tpu_custom_call.1} parent=5 // pred_region
        %s883 = ssub.s32 %s18, 2
        // Predicated region
        $region57: #{tpu_custom_call.1} parent=55 // pred_check
          %p884 = pneg %p199
        $region58: #{tpu_custom_call.1} parent=55 // pred_check_branch
          %886 = sbr.rel (%p884) target = $region60
        $region59: #{tpu_custom_call.1} parent=55 // pred_region
          %s887 = sand.u32 %s184, 1
          %s888 = scalar_lea.sflag [#allocation4], %s887
          %s889 = sand.u32 %s184, 1
          %s890 = scalar_lea.vmem [#allocation3], %s889
          %891 = dma.done %s888, 16
        $region60: #{tpu_custom_call.1} parent=55 // pred_fallthru
          _
      $region56: #{tpu_custom_call.1} parent=5 // pred_fallthru
        _
    $region6: #{tpu_custom_call.1} parent=1 // loop_footer
      %s22 = sadd.s32 1, %s18
    $region7: #{tpu_custom_call.1} parent=1 // loop_footer_branch
      %17 = sbr.rel target = $region3
    $region8: #{tpu_custom_call.1} parent=1 // loop_exit
      _
    %892 = vsyncpa [#allocation4], 1
    %s893 = scalar_lea.sflag [#allocation4], 1
    %894 = vsyncpa %s893, 1

</llo_original>
